<compile_context>
chip_gen: v6e
topology: v6e:2x2x1
jax: 0.10.0
libtpu: 0.0.40
codegen_flags: <defaults>
</compile_context>

<pallas_src>
import functools

import jax
import jax.numpy as jnp
from jax import lax
from jax.experimental import pallas as pl
from jax.experimental.pallas import tpu as pltpu

_IMPLEMENTED = ("MSELoss", "L1Loss", "ScaledMSELoss")


def _round_up(x, m):
    return ((x + m - 1) // m) * m


def _make_kernel(loss_name_list):
    """Build a kernel specialized at trace time on the static loss list.

    No array constants are closed over: per-row behaviour is selected with
    broadcasted_iota row indices compared against static Python ints.
    """
    names = tuple(loss_name_list)
    for n in names:
        if n not in _IMPLEMENTED:
            raise NotImplementedError(
                f"{n} not implemented. Implemented losses are: {list(_IMPLEMENTED)}")

    l1_rows = tuple(i for i, n in enumerate(names) if n == "L1Loss")
    scaled_rows = tuple(i for i, n in enumerate(names) if n == "ScaledMSELoss")
    all_l1 = len(l1_rows) == len(names)

    def kernel(x_ref, t_ref, o_ref):
        # x_ref: (1, TB) shared inputs  (broadcast over loss rows)
        # t_ref: (L, TB) per-loss targets
        # o_ref: (L, TB) per-loss, per-sample losses
        diff = x_ref[...] - t_ref[...]          # (L, TB), sublane-broadcast of x

        if all_l1:
            o_ref[...] = jnp.abs(diff)
            return

        res = diff * diff                       # MSE everywhere by default

        if scaled_rows:                         # rows that get the 0.01 scale
            row = lax.broadcasted_iota(jnp.int32, diff.shape, 0)
            smask = functools.reduce(jnp.logical_or,
                                     [row == r for r in scaled_rows])
            res = jnp.where(smask, res * 0.01, res)

        if l1_rows:                             # rows that are |diff|
            row = lax.broadcasted_iota(jnp.int32, diff.shape, 0)
            lmask = functools.reduce(jnp.logical_or,
                                     [row == r for r in l1_rows])
            res = jnp.where(lmask, jnp.abs(diff), res)

        o_ref[...] = res

    return kernel


@functools.partial(
    jax.jit, static_argnames=("loss_name_list", "target_transposed", "tile_b"))
def multi_loss(inputs, target, loss_name_list, *,
               target_transposed=False, tile_b=65536):
    """inputs: (B, 1).  target: (B, L) (or (L, B) if target_transposed=True).

    Returns (L, B), matching torch.stack([loss_i(inputs, target[:, i:i+1]).view(-1)
    for i], dim=0).
    """
    loss_name_list = tuple(loss_name_list)
    B = inputs.shape[0]
    L = len(loss_name_list)
    assert inputs.shape == (B, 1)

    dtype = jnp.promote_types(inputs.dtype, target.dtype)

    # (B,1) -> (1,B) is layout-preserving (free); batch lives on the lane axis.
    x = inputs.reshape(1, B).astype(dtype)

    if target_transposed:
        # Preferred path: caller supplies target already as (L, B); no extra
        # HBM round-trip.
        assert target.shape == (L, B)
        t = target.astype(dtype)
    else:
        # API-parity path: one XLA transpose pass over target (2*L*B*itemsize
        # bytes).  See header comment for why this is NOT fused in-kernel.
        assert target.shape == (B, L)
        t = jnp.transpose(target).astype(dtype)

    # Lane-dense tile: multiple of 128, capped at tile_b.  No padding of B:
    # Pallas masks the partial last block on writeback.
    tb = min(int(tile_b), _round_up(B, 128))
    grid = (pl.cdiv(B, tb),)

    kernel = _make_kernel(loss_name_list)
    itemsize = jnp.dtype(dtype).itemsize
    cost = pl.CostEstimate(
        flops=3 * L * B,                         # sub + mul (+scale/select)
        transcendentals=0,
        bytes_accessed=(2 * L + 1) * B * itemsize)

    out = pl.pallas_call(
        kernel,
        out_shape=jax.ShapeDtypeStruct((L, B), dtype),
        grid=grid,
        in_specs=[
            pl.BlockSpec((1, tb), lambda i: (0, i)),
            pl.BlockSpec((L, tb), lambda i: (0, i)),
        ],
        out_specs=pl.BlockSpec((L, tb), lambda i: (0, i)),
        compiler_params=pltpu.CompilerParams(
            # CORE_PARALLEL would be the real v7x dual-TC lever; kept portable.
            dimension_semantics=("parallel",),
            vmem_limit_bytes=48 * 1024 * 1024,
        ),
        cost_estimate=cost,
    )(x, t)
    return out


def _reference(inputs, target, loss_name_list):
    """Pure-JAX reference mirroring the PyTorch module."""
    outs = []
    for i, name in enumerate(loss_name_list):
        diff = inputs.astype(jnp.float32) - target[:, i][:, None].astype(jnp.float32)
        if name == "MSELoss":
            o = diff * diff
        elif name == "L1Loss":
            o = jnp.abs(diff)
        elif name == "ScaledMSELoss":
            o = 0.01 * diff * diff
        else:
            raise NotImplementedError(name)
        outs.append(o.reshape(-1))
    return jnp.stack(outs, axis=0)


if __name__ == "__main__":
    key = jax.random.PRNGKey(0)
    loss_name_list = ("MSELoss", "L1Loss", "ScaledMSELoss")
    L = len(loss_name_list)
    k1, k2, k3, k4, k5, k6 = jax.random.split(key, 6)

    # Case 1: B a multiple of 128 (single full block).
    B = 128
    inputs = jax.random.normal(k1, (B, 1), dtype=jnp.float32)
    target = jax.random.normal(k2, (B, L), dtype=jnp.float32)
    out = jax.block_until_ready(multi_loss(inputs, target, loss_name_list))
    ref = _reference(inputs, target, loss_name_list)
    assert out.shape == (L, B)
    assert jnp.allclose(out, ref, atol=1e-6, rtol=1e-6), "mismatch (B=128)"

    # Case 2: B not a multiple of 128 (partial last block, masked writeback).
    B2 = 300
    inputs2 = jax.random.normal(k3, (B2, 1), dtype=jnp.float32)
    target2 = jax.random.normal(k4, (B2, L), dtype=jnp.float32)
    out2 = jax.block_until_ready(multi_loss(inputs2, target2, loss_name_list))
    ref2 = _reference(inputs2, target2, loss_name_list)
    assert out2.shape == (L, B2)
    assert jnp.allclose(out2, ref2, atol=1e-6, rtol=1e-6), "mismatch (B=300)"

    # Case 3: preferred layout path — target already supplied as (L, B);
    # skips the wrapper transpose pass entirely.
    out3 = jax.block_until_ready(
        multi_loss(inputs2, jnp.transpose(target2), loss_name_list,
                   target_transposed=True))
    assert jnp.allclose(out3, ref2, atol=1e-6, rtol=1e-6), "mismatch (pre-T)"

    # Case 4: all-L1 specialization, B < 128 (single partial block).
    names4 = ("L1Loss", "L1Loss")
    B4 = 64
    inputs4 = jax.random.normal(k5, (B4, 1), dtype=jnp.float32)
    target4 = jax.random.normal(k6, (B4, len(names4)), dtype=jnp.float32)
    out4 = jax.block_until_ready(multi_loss(inputs4, target4, names4))
    ref4 = _reference(inputs4, target4, names4)
    assert out4.shape == (len(names4), B4)
    assert jnp.allclose(out4, ref4, atol=1e-6, rtol=1e-6), "mismatch (all-L1)"

    print("KERNEL_OK")
</pallas_src>

<mosaic_0001>
module attributes {stable_mosaic.version = 11 : i64} {
  func.func @kernel(%arg0: i32, %arg1: memref<1x128xf32, #tpu.memory_space<vmem>>, %arg2: memref<3x128xf32, #tpu.memory_space<vmem>>, %arg3: memref<3x128xf32, #tpu.memory_space<vmem>>) attributes {dimension_semantics = [#tpu.dimension_semantics<parallel>], iteration_bounds = array<i64: 1>, scalar_prefetch = 0 : i64, scratch_operands = 0 : i64, tpu.core_type = #tpu.core_type<tc>, window_params = [{transform_indices = @transform_0, window_bounds = array<i64: 1, 128>}, {transform_indices = @transform_1, window_bounds = array<i64: 3, 128>}, {transform_indices = @transform_2, window_bounds = array<i64: 3, 128>}]} {
    %c0 = arith.constant 0 : index
    %c0_0 = arith.constant 0 : index
    %0 = vector.load %arg1[%c0, %c0_0] : memref<1x128xf32, #tpu.memory_space<vmem>>, vector<1x128xf32>
    %c0_1 = arith.constant 0 : index
    %c0_2 = arith.constant 0 : index
    %1 = vector.load %arg2[%c0_1, %c0_2] : memref<3x128xf32, #tpu.memory_space<vmem>>, vector<3x128xf32>
    %2 = vector.broadcast %0 : vector<1x128xf32> to vector<3x128xf32>
    %3 = arith.subf %2, %1 : vector<3x128xf32>
    %4 = arith.mulf %3, %3 : vector<3x128xf32>
    %5 = tpu.iota {dimensions = array<i32: 0>} : vector<3x128xi32>
    %c2_i32 = arith.constant 2 : i32
    %6 = vector.broadcast %c2_i32 : i32 to vector<3x128xi32>
    %7 = arith.cmpi eq, %5, %6 : vector<3x128xi32>
    %cst = arith.constant 0.00999999977 : f32
    %8 = vector.broadcast %cst : f32 to vector<3x128xf32>
    %9 = arith.mulf %4, %8 : vector<3x128xf32>
    %10 = arith.select %7, %9, %4 : vector<3x128xi1>, vector<3x128xf32>
    %11 = tpu.iota {dimensions = array<i32: 0>} : vector<3x128xi32>
    %c1_i32 = arith.constant 1 : i32
    %12 = vector.broadcast %c1_i32 : i32 to vector<3x128xi32>
    %13 = arith.cmpi eq, %11, %12 : vector<3x128xi32>
    %14 = math.absf %3 : vector<3x128xf32>
    %15 = arith.select %13, %14, %10 : vector<3x128xi1>, vector<3x128xf32>
    %c0_3 = arith.constant 0 : index
    %c0_4 = arith.constant 0 : index
    %16 = vector.load %arg3[%c0_3, %c0_4] : memref<3x128xf32, #tpu.memory_space<vmem>>, vector<3x128xf32>
    tpu.vector_store %arg3[%c0_3, %c0_4], %15 {strides = array<i32>} : memref<3x128xf32, #tpu.memory_space<vmem>>, vector<3x128xf32>,
    return
  }
  func.func @transform_0(%arg0: i32) -> (i32, i32) {
    %c0_i32 = arith.constant 0 : i32
    %c0_i32_0 = arith.constant 0 : i32
    return %c0_i32, %arg0 : i32, i32
  }
  func.func @transform_1(%arg0: i32) -> (i32, i32) {
    %c0_i32 = arith.constant 0 : i32
    %c0_i32_0 = arith.constant 0 : i32
    return %c0_i32, %arg0 : i32, i32
  }
  func.func @transform_2(%arg0: i32) -> (i32, i32) {
    %c0_i32 = arith.constant 0 : i32
    %c0_i32_0 = arith.constant 0 : i32
    return %c0_i32, %arg0 : i32, i32
  }
}

</mosaic_0001>

<llo_original>
// kernel: multi_loss.1
$region0: #{multi_loss.1}
  #allocation0 [shape = 'u32[]', space=smem, size = 0x4, offset = 0x4, fixed_abs, tag = 'smem constant byte address 0x4 - core index']
  #allocation1 [shape = 'u32[144,128]{1,0:T(1,128)}', space=vmem, size = 0x12000, scoped, tag = 'internal scratch']
  %s0 = inlined_call_operand.vmem [shape: f32[1,128], index: 0, kind: input, shape index: {}]
  %s1 = inlined_call_operand.vmem [shape: f32[3,128], index: 1, kind: input, shape index: {}]
  %s2 = inlined_call_operand.hbm [shape: f32[3,128], index: 2, kind: output, shape index: {}]
  %s3 = sld [smem:[#allocation0]]
  $region18: #{multi_loss.1} parent=0
    _
  %s5 = ssub.s32 1, %s3
  %s6 = scalar_select 0, %s5, %s3
  $region1: #{multi_loss.1} parent=0
    #allocation2 [shape = 'u8[2048]{0}', space=vmem, size = 0x800, scoped, tag = 'output window, operand 0, single buffered']
    #allocation3 [shape = 's32[1]{0}', space=sflag, size = 0x4, scoped, tag = 'scoped memory for multi_loss.1']
    %7 = vsyncpa [#allocation3], 0
    // Predicated region
    $region2: #{multi_loss.1} parent=1 // pred_check
      _
    $region3: #{multi_loss.1} parent=1 // pred_check_branch
      %9 = sbr.rel (0) target = $region5
    $region4: #{multi_loss.1} parent=1 // pred_region
      _
    $region5: #{multi_loss.1} parent=1 // pred_fallthru
      _
    // Predicated region
    $region6: #{multi_loss.1} parent=1 // pred_check
      _
    $region7: #{multi_loss.1} parent=1 // pred_check_branch
      %11 = sbr.rel (0) target = $region9
    $region8: #{multi_loss.1} parent=1 // pred_region
      _
    $region9: #{multi_loss.1} parent=1 // pred_fallthru
      _
    %v12 = vld [vmem:[%s0] sm:$0x1]
    %v13 = vld [vmem:[%s1] sm:$0x7]
    %v15 = vlaneseq
    %v16 = vshrl.u32 %v15, 7
    %v17 = vsub.s32 0, %v16
    %v18 = vrot.slane %v12, %v17
    %v20 = vsub.f32 %v18, %v13
    %v21 = vmul.f32 %v20, %v20
    %v22 = vlaneseq
    %v23 = vshrl.u32 %v22, 7
    %vm24 = vcmp.eq.s32.totalorder %v23, 2
    %v25 = vmul.f32 %v21, 0.01
    %v26 = vsel %vm24, %v25, %v21
    %vm27 = vcmp.eq.s32.totalorder %v23, 1
    %v28 = vand.u32 2147483647, %v20
    %v29 = vsel %vm27, %v28, %v26
    %30 = vst [vmem:[#allocation2] sm:$0x7] %v29
    // Predicated region
    $region10: #{multi_loss.1} parent=1 // pred_check
      _
    $region11: #{multi_loss.1} parent=1 // pred_check_branch
      %32 = sbr.rel (0) target = $region13
    $region12: #{multi_loss.1} parent=1 // pred_region
      %s34 = ssub.s32 64, 64
      %35 = vsyncadd [#allocation3], %s34
      %s37 = sshll.u32 [#allocation2], 4
      %s38 = int_to_ptr.vmem [resolvable:$true] %s37
      %40 = dma.vmem_to_hbm [thread:$0]  %s38, 64, %s2, [#allocation3]
    $region13: #{multi_loss.1} parent=1 // pred_fallthru
      _
    // Predicated region
    $region14: #{multi_loss.1} parent=1 // pred_check
      _
    $region15: #{multi_loss.1} parent=1 // pred_check_branch
      %42 = sbr.rel (0) target = $region17
    $region16: #{multi_loss.1} parent=1 // pred_region
      %43 = dma.done [#allocation3], 64
    $region17: #{multi_loss.1} parent=1 // pred_fallthru
      _
    %44 = vsyncpa [#allocation3], 1

</llo_original>
